<compile_context>
chip_gen: v7x
topology: tpu7x:2x2x1
jax: 0.10.0
libtpu: 0.0.40
codegen_flags: <defaults>
</compile_context>

<pallas_src>
import functools
import warnings

import jax
import jax.numpy as jnp
from jax.experimental import pallas as pl
from jax.experimental.pallas import tpu as pltpu


def _round_up(x, m):
    return ((x + m - 1) // m) * m


# ---------------------------------------------------------------------------
# Feature check: single-buffered (resident) operands via pipeline_mode.
# Warn loudly instead of silently double-buffering the weights (which would
# double the resident footprint -- a real problem on v7x's 64 MiB VMEM).
# ---------------------------------------------------------------------------
def _check_pipeline_mode():
    try:
        pl.BlockSpec((8, 128), lambda i: (0, 0), pipeline_mode=pl.Buffered(1))
        return True
    except Exception:
        return False


_HAS_PIPELINE_MODE = _check_pipeline_mode()
if not _HAS_PIPELINE_MODE:
    warnings.warn(
        "pl.BlockSpec(pipeline_mode=pl.Buffered(1)) is not supported by this "
        "jax version; grid-invariant weights will be DOUBLE-buffered in VMEM "
        "(2x resident weight footprint; may not fit v7x for large models).")


def _resident_spec(shape, index_map):
    """Spec for grid-invariant operands: constant block, single VMEM buffer."""
    if _HAS_PIPELINE_MODE:
        return pl.BlockSpec(shape, index_map, pipeline_mode=pl.Buffered(1))
    return pl.BlockSpec(shape, index_map)


# ---------------------------------------------------------------------------
# Kernel. Grid = (row_tiles, hidden_chunks); hidden chunk axis is "arbitrary"
# (reduction into an f32 accumulator), row axis is "parallel".
# ---------------------------------------------------------------------------
def _ffn_kernel(x_ref, gamma_ref, beta_ref, w1_ref, b1_ref, w2_ref, b2_ref,
                o_ref, xn_ref, acc_ref, *, gelu_approximate):
    k = pl.program_id(1)

    # First hidden chunk for this row tile: LayerNorm (f32 stats, eps=1e-5,
    # biased variance -- matches torch.nn.LayerNorm) + accumulator init.
    @pl.when(k == 0)
    def _():
        xf = x_ref[...].astype(jnp.float32)
        mean = jnp.mean(xf, axis=-1, keepdims=True)
        xc = xf - mean
        var = jnp.mean(xc * xc, axis=-1, keepdims=True)
        inv = jax.lax.rsqrt(var + 1e-5)
        xn = xc * inv * gamma_ref[...].astype(jnp.float32) \
            + beta_ref[...].astype(jnp.float32)
        xn_ref[...] = xn.astype(xn_ref.dtype)      # staged bf16 MXU LHS
        acc_ref[...] = jnp.zeros_like(acc_ref)

    # Linear(dim -> hidden chunk), bias, GELU, then accumulate
    # Linear(hidden chunk -> dim).  MXU operands in matmul dtype, f32 accum.
    h = jnp.dot(xn_ref[...], w1_ref[...], preferred_element_type=jnp.float32)
    h = h + b1_ref[...].astype(jnp.float32)
    # approximate=True -> tanh GELU on the EUP slot (cheap); torch.nn.GELU()
    # default is exact erf (use gelu_approximate=False for bit-closer match).
    h = jax.nn.gelu(h, approximate=gelu_approximate)
    # Dropout(p=0.0) is the identity.
    acc_ref[...] += jnp.dot(h.astype(w2_ref.dtype), w2_ref[...],
                            preferred_element_type=jnp.float32)

    # Last hidden chunk: add the output bias and write the tile.
    @pl.when(k == pl.num_programs(1) - 1)
    def _():
        o_ref[...] = (acc_ref[...]
                      + b2_ref[...].astype(jnp.float32)).astype(o_ref.dtype)


# ---------------------------------------------------------------------------
# Tiling heuristics.
# ---------------------------------------------------------------------------
def _pick_row_tile(rows, cap, align):
    """Largest row tile <= cap that is a multiple of `align`, divides `rows`
    exactly (so no wrapper-side pad/copy HBM pass) and -- when possible --
    yields >= 2 grid steps so both v7x TensorCores get work.
    Returns None if `rows` is not align-aligned (caller falls back to pad)."""
    if rows % align != 0:
        return None
    best = None
    cand = (min(cap, rows) // align) * align
    while cand >= align:
        if rows % cand == 0:
            if best is None:
                best = cand
            if rows // cand >= 2:
                return cand
        cand -= align
    return best


def _pick_hidden_chunk(dim, hidden, tm, w_item, x_item, vmem_limit):
    """Keep W1/W2 fully resident when they fit comfortably; otherwise chunk
    the hidden axis so the per-step VMEM footprint stays inside the limit."""
    budget = int(vmem_limit * 0.6)

    def footprint(tk, weight_bufs):
        weights = 2 * dim * tk * w_item * weight_bufs       # W1 + W2 chunks
        acts = 2 * tm * dim * x_item * 2                    # x + out, 2-buffered
        scratch = tm * dim * (w_item + 4)                   # xn + f32 accumulator
        inter = tm * tk * 4                                 # f32 GELU intermediate
        biases = (tk + 2 * dim) * 4 * weight_bufs
        return weights + acts + scratch + inter + biases

    if footprint(hidden, 1) <= budget:
        return hidden
    for cand in (4096, 2048, 1024, 512, 256, 128):
        if cand < hidden and hidden % cand == 0 and footprint(cand, 2) <= budget:
            return cand
    return 128 if hidden % 128 == 0 else hidden


def _vmem_limit_bytes():
    """Adaptive VMEM limit: ~96 MiB on v5e/v6e (128 MiB physical), <=48 MiB on
    v7x (64 MiB physical) leaving headroom for compiler scratch / semaphores."""
    try:
        cap = pltpu.get_tpu_info().vmem_capacity_bytes
    except Exception:
        cap = 64 << 20
    if cap >= (100 << 20):
        return 96 << 20
    return max(32 << 20, min(48 << 20, (cap * 3) // 4))


# ---------------------------------------------------------------------------
# Wrapper.
# ---------------------------------------------------------------------------
@functools.partial(
    jax.jit,
    static_argnames=("tile_rows", "matmul_dtype", "gelu_approximate",
                     "hidden_chunk"))
def feed_forward(x, gamma, beta, w1, b1, w2, b2, *,
                 tile_rows=None, matmul_dtype=jnp.bfloat16,
                 gelu_approximate=True, hidden_chunk=None):
    """x: (batch, seq, dim) -> (batch, seq, dim).  w1: (dim, hidden), w2:
    (hidden, dim) (i.e. y = x @ W + b layout)."""
    b, s, dim = x.shape
    hidden = w1.shape[1]
    rows = b * s

    vmem_limit = _vmem_limit_bytes()
    if tile_rows is None:
        # Bigger row tiles on 128-MiB-VMEM chips (v5e/v6e); 256 on v7x.
        tile_rows = 512 if vmem_limit >= (96 << 20) else 256

    w_item = jnp.dtype(matmul_dtype).itemsize
    x_item = jnp.dtype(x.dtype).itemsize
    # bf16 packs 16 rows per sublane-packed vreg; keep tiles 16-row aligned.
    align = 16 if w_item == 2 else 8

    x2 = x.reshape(rows, dim)
    tm = _pick_row_tile(rows, tile_rows, align)
    if tm is None:
        # Ragged row count: fall back to padding (extra HBM pass; only hit
        # when batch*seq is not align-aligned).
        tm = min(tile_rows, _round_up(rows, align))
        rows_padded = _round_up(rows, tm)
        x2 = jnp.pad(x2, ((0, rows_padded - rows), (0, 0)))
    else:
        rows_padded = rows

    if hidden_chunk is not None:
        tk = hidden_chunk
    else:
        tk = _pick_hidden_chunk(dim, hidden, tm, w_item, x_item, vmem_limit)
    if hidden % tk != 0:
        raise ValueError(f"hidden ({hidden}) must be divisible by chunk {tk}")
    nk = hidden // tk

    # Guarantee the MXU runs in the fast narrow dtype regardless of caller
    # dtype (f32 weights would otherwise force the slow f32 MXU path).
    w1c = w1.astype(matmul_dtype)
    w2c = w2.astype(matmul_dtype)

    gamma2 = gamma.reshape(1, dim)
    beta2 = beta.reshape(1, dim)
    b1_2 = b1.reshape(1, hidden)
    b2_2 = b2.reshape(1, dim)

    grid = (rows_padded // tm, nk)

    def row_map(i, k):
        return (i, 0)

    if nk == 1:
        w1_spec = _resident_spec((dim, tk), lambda i, k: (0, 0))
        b1_spec = _resident_spec((1, tk), lambda i, k: (0, 0))
        w2_spec = _resident_spec((tk, dim), lambda i, k: (0, 0))
    else:
        w1_spec = pl.BlockSpec((dim, tk), lambda i, k: (0, k))
        b1_spec = pl.BlockSpec((1, tk), lambda i, k: (0, k))
        w2_spec = pl.BlockSpec((tk, dim), lambda i, k: (k, 0))

    flops = 2 * rows_padded * dim * hidden * 2              # two matmuls
    bytes_accessed = (2 * rows_padded * dim * x_item        # x in + out
                      + 2 * dim * hidden * w_item           # W1 + W2
                      + (hidden + 4 * dim) * 4)             # biases + LN params
    cost = pl.CostEstimate(flops=flops,
                           transcendentals=rows_padded * hidden,
                           bytes_accessed=bytes_accessed)

    kernel = functools.partial(_ffn_kernel, gelu_approximate=gelu_approximate)

    out = pl.pallas_call(
        kernel,
        out_shape=jax.ShapeDtypeStruct((rows_padded, dim), x.dtype),
        grid_spec=pltpu.PrefetchScalarGridSpec(
            num_scalar_prefetch=0,
            grid=grid,
            in_specs=[
                pl.BlockSpec((tm, dim), row_map),               # x rows
                _resident_spec((1, dim), lambda i, k: (0, 0)),  # gamma
                _resident_spec((1, dim), lambda i, k: (0, 0)),  # beta
                w1_spec,                                        # W1 (matmul dtype)
                b1_spec,                                        # b1
                w2_spec,                                        # W2 (matmul dtype)
                _resident_spec((1, dim), lambda i, k: (0, 0)),  # b2
            ],
            out_specs=pl.BlockSpec((tm, dim), row_map),
            scratch_shapes=[
                pltpu.VMEM((tm, dim), matmul_dtype),   # normalized x (MXU LHS)
                pltpu.VMEM((tm, dim), jnp.float32),    # f32 output accumulator
            ],
        ),
        compiler_params=pltpu.CompilerParams(
            dimension_semantics=("parallel", "arbitrary"),
            vmem_limit_bytes=vmem_limit,
        ),
        cost_estimate=cost,
    )(x2, gamma2, beta2, w1c, b1_2, w2c, b2_2)

    if rows_padded != rows:
        out = out[:rows]
    return out.reshape(b, s, dim)


# ---------------------------------------------------------------------------
# Pure-JAX reference (f32 math, matches torch module semantics).
# ---------------------------------------------------------------------------
def _reference(x, gamma, beta, w1, b1, w2, b2, *, gelu_approximate):
    xf = x.astype(jnp.float32)
    mean = jnp.mean(xf, axis=-1, keepdims=True)
    var = jnp.mean((xf - mean) ** 2, axis=-1, keepdims=True)
    xn = (xf - mean) / jnp.sqrt(var + 1e-5) * gamma + beta
    h = jax.nn.gelu(xn @ w1 + b1, approximate=gelu_approximate)
    return (h @ w2 + b2).astype(x.dtype)


if __name__ == "__main__":
    key = jax.random.PRNGKey(0)
    batch, seq, dim, hidden = 2, 16, 128, 256

    k_x, k_w1, k_b1, k_w2, k_b2 = jax.random.split(key, 5)
    x = jax.random.normal(k_x, (batch, seq, dim), dtype=jnp.float32)

    gamma = jnp.ones((dim,), jnp.float32)
    beta = jnp.zeros((dim,), jnp.float32)
    w1 = jax.random.normal(k_w1, (dim, hidden), jnp.float32) * 0.02
    b1 = jax.random.normal(k_b1, (hidden,), jnp.float32) * 0.02
    w2 = jax.random.normal(k_w2, (hidden, dim), jnp.float32) * 0.02
    b2 = jax.random.normal(k_b2, (dim,), jnp.float32) * 0.02

    # 1) Fast path: bf16 MXU + tanh GELU (default).  bf16 rounding => looser tol.
    out = jax.block_until_ready(feed_forward(x, gamma, beta, w1, b1, w2, b2))
    ref_tanh = _reference(x, gamma, beta, w1, b1, w2, b2, gelu_approximate=True)
    assert out.shape == (batch, seq, dim)
    assert jnp.allclose(out, ref_tanh, atol=2e-2, rtol=2e-2), \
        "bf16 fast path mismatch vs reference"

    # 2) Exact-semantics path: f32 matmul + exact-erf GELU (torch default).
    out_exact = jax.block_until_ready(
        feed_forward(x, gamma, beta, w1, b1, w2, b2,
                     matmul_dtype=jnp.float32, gelu_approximate=False))
    ref_exact = _reference(x, gamma, beta, w1, b1, w2, b2,
                           gelu_approximate=False)
    assert jnp.allclose(out_exact, ref_exact, atol=1e-4, rtol=1e-4), \
        "exact (f32/erf) path mismatch vs reference"

    # 3) Hidden-chunked reduction path (as used for large models on v7x).
    out_chunked = jax.block_until_ready(
        feed_forward(x, gamma, beta, w1, b1, w2, b2, hidden_chunk=128))
    assert jnp.allclose(out_chunked, ref_tanh, atol=2e-2, rtol=2e-2), \
        "hidden-chunked path mismatch vs reference"

    print("KERNEL_OK")
</pallas_src>

<mosaic_0001>
module attributes {stable_mosaic.version = 11 : i64} {
  func.func @_ffn_kernel(%arg0: i32, %arg1: i32, %arg2: memref<16x128xf32, #tpu.memory_space<vmem>>, %arg3: memref<1x128xf32, #tpu.memory_space<vmem>>, %arg4: memref<1x128xf32, #tpu.memory_space<vmem>>, %arg5: memref<128x256xbf16, #tpu.memory_space<vmem>>, %arg6: memref<1x256xf32, #tpu.memory_space<vmem>>, %arg7: memref<256x128xbf16, #tpu.memory_space<vmem>>, %arg8: memref<1x128xf32, #tpu.memory_space<vmem>>, %arg9: memref<16x128xf32, #tpu.memory_space<vmem>>, %arg10: memref<16x128xbf16, #tpu.memory_space<vmem>>, %arg11: memref<16x128xf32, #tpu.memory_space<vmem>>) attributes {dimension_semantics = [#tpu.dimension_semantics<parallel>, #tpu.dimension_semantics<arbitrary>], iteration_bounds = array<i64: 2, 1>, scalar_prefetch = 0 : i64, scratch_operands = 2 : i64, tpu.core_type = #tpu.core_type<tc>, window_params = [{transform_indices = @transform_0, window_bounds = array<i64: 16, 128>}, {pipeline_mode = #tpu.pipeline_mode<synchronous>, transform_indices = @transform_1, window_bounds = array<i64: 1, 128>}, {pipeline_mode = #tpu.pipeline_mode<synchronous>, transform_indices = @transform_2, window_bounds = array<i64: 1, 128>}, {pipeline_mode = #tpu.pipeline_mode<synchronous>, transform_indices = @transform_3, window_bounds = array<i64: 128, 256>}, {pipeline_mode = #tpu.pipeline_mode<synchronous>, transform_indices = @transform_4, window_bounds = array<i64: 1, 256>}, {pipeline_mode = #tpu.pipeline_mode<synchronous>, transform_indices = @transform_5, window_bounds = array<i64: 256, 128>}, {pipeline_mode = #tpu.pipeline_mode<synchronous>, transform_indices = @transform_6, window_bounds = array<i64: 1, 128>}, {transform_indices = @transform_7, window_bounds = array<i64: 16, 128>}]} {
    %c0_i32 = arith.constant 0 : i32
    %0 = arith.cmpi eq, %arg1, %c0_i32 : i32
    %1 = arith.extui %0 : i1 to i32
    %c0_i32_0 = arith.constant 0 : i32
    %2 = arith.cmpi ne, %1, %c0_i32_0 : i32
    scf.if %2 {
      %c0_19 = arith.constant 0 : index
      %c0_20 = arith.constant 0 : index
      %31 = vector.load %arg2[%c0_19, %c0_20] : memref<16x128xf32, #tpu.memory_space<vmem>>, vector<16x128xf32>
      %cst_21 = arith.constant dense<0.000000e+00> : vector<16xf32>
      %32 = vector.multi_reduction <add>, %31, %cst_21 [1] : vector<16x128xf32> to vector<16xf32>
      %33 = vector.shape_cast %32 : vector<16xf32> to vector<16x1xf32>
      %cst_22 = arith.constant 1.280000e+02 : f32
      %34 = vector.broadcast %cst_22 : f32 to vector<16x1xf32>
      %35 = arith.divf %33, %34 : vector<16x1xf32>
      %36 = vector.broadcast %35 : vector<16x1xf32> to vector<16x128xf32>
      %37 = arith.subf %31, %36 : vector<16x128xf32>
      %38 = arith.mulf %37, %37 : vector<16x128xf32>
      %cst_23 = arith.constant dense<0.000000e+00> : vector<16xf32>
      %39 = vector.multi_reduction <add>, %38, %cst_23 [1] : vector<16x128xf32> to vector<16xf32>
      %40 = vector.shape_cast %39 : vector<16xf32> to vector<16x1xf32>
      %cst_24 = arith.constant 1.280000e+02 : f32
      %41 = vector.broadcast %cst_24 : f32 to vector<16x1xf32>
      %42 = arith.divf %40, %41 : vector<16x1xf32>
      %cst_25 = arith.constant 9.99999974E-6 : f32
      %43 = vector.broadcast %cst_25 : f32 to vector<16x1xf32>
      %44 = arith.addf %42, %43 : vector<16x1xf32>
      %45 = math.rsqrt %44 : vector<16x1xf32>
      %46 = vector.broadcast %45 : vector<16x1xf32> to vector<16x128xf32>
      %47 = arith.mulf %37, %46 : vector<16x128xf32>
      %c0_26 = arith.constant 0 : index
      %c0_27 = arith.constant 0 : index
      %48 = vector.load %arg3[%c0_26, %c0_27] : memref<1x128xf32, #tpu.memory_space<vmem>>, vector<1x128xf32>
      %49 = vector.broadcast %48 : vector<1x128xf32> to vector<16x128xf32>
      %50 = arith.mulf %47, %49 : vector<16x128xf32>
      %c0_28 = arith.constant 0 : index
      %c0_29 = arith.constant 0 : index
      %51 = vector.load %arg4[%c0_28, %c0_29] : memref<1x128xf32, #tpu.memory_space<vmem>>, vector<1x128xf32>
      %52 = vector.broadcast %51 : vector<1x128xf32> to vector<16x128xf32>
      %53 = arith.addf %50, %52 : vector<16x128xf32>
      %54 = arith.truncf %53 : vector<16x128xf32> to vector<16x128xbf16>
      %c0_30 = arith.constant 0 : index
      %c0_31 = arith.constant 0 : index
      %55 = vector.load %arg10[%c0_30, %c0_31] : memref<16x128xbf16, #tpu.memory_space<vmem>>, vector<16x128xbf16>
      tpu.vector_store %arg10[%c0_30, %c0_31], %54 {strides = array<i32>} : memref<16x128xbf16, #tpu.memory_space<vmem>>, vector<16x128xbf16>,
      %cst_32 = arith.constant 0.000000e+00 : f32
      %56 = vector.broadcast %cst_32 : f32 to vector<16x128xf32>
      %c0_33 = arith.constant 0 : index
      %c0_34 = arith.constant 0 : index
      %57 = vector.load %arg11[%c0_33, %c0_34] : memref<16x128xf32, #tpu.memory_space<vmem>>, vector<16x128xf32>
      tpu.vector_store %arg11[%c0_33, %c0_34], %56 {strides = array<i32>} : memref<16x128xf32, #tpu.memory_space<vmem>>, vector<16x128xf32>,
    } else {
    }
    %c0 = arith.constant 0 : index
    %c0_1 = arith.constant 0 : index
    %3 = vector.load %arg10[%c0, %c0_1] : memref<16x128xbf16, #tpu.memory_space<vmem>>, vector<16x128xbf16>
    %c0_2 = arith.constant 0 : index
    %c0_3 = arith.constant 0 : index
    %4 = vector.load %arg5[%c0_2, %c0_3] : memref<128x256xbf16, #tpu.memory_space<vmem>>, vector<128x256xbf16>
    %cst = arith.constant dense<0.000000e+00> : vector<16x256xf32>
    %5 = tpu.matmul %3, %4, %cst {dimension_numbers = #tpu.dot_dimension_numbers<[1], [0], [0], [1], [0, 0, 1, 1], [], []>} : vector<16x128xbf16>, vector<128x256xbf16>, vector<16x256xf32> -> vector<16x256xf32>
    %c0_4 = arith.constant 0 : index
    %c0_5 = arith.constant 0 : index
    %6 = vector.load %arg6[%c0_4, %c0_5] : memref<1x256xf32, #tpu.memory_space<vmem>>, vector<1x256xf32>
    %7 = vector.broadcast %6 : vector<1x256xf32> to vector<16x256xf32>
    %8 = arith.addf %5, %7 : vector<16x256xf32>
    %9 = arith.mulf %8, %8 : vector<16x256xf32>
    %10 = arith.mulf %8, %9 : vector<16x256xf32>
    %cst_6 = arith.constant 4.471500e-02 : f32
    %11 = vector.broadcast %cst_6 : f32 to vector<16x256xf32>
    %12 = arith.mulf %11, %10 : vector<16x256xf32>
    %13 = arith.addf %8, %12 : vector<16x256xf32>
    %cst_7 = arith.constant 0.797884583 : f32
    %14 = vector.broadcast %cst_7 : f32 to vector<16x256xf32>
    %15 = arith.mulf %14, %13 : vector<16x256xf32>
    %16 = math.tanh %15 : vector<16x256xf32>
    %cst_8 = arith.constant 1.000000e+00 : f32
    %17 = vector.broadcast %cst_8 : f32 to vector<16x256xf32>
    %18 = arith.addf %17, %16 : vector<16x256xf32>
    %cst_9 = arith.constant 5.000000e-01 : f32
    %19 = vector.broadcast %cst_9 : f32 to vector<16x256xf32>
    %20 = arith.mulf %19, %18 : vector<16x256xf32>
    %21 = arith.mulf %8, %20 : vector<16x256xf32>
    %c0_10 = arith.constant 0 : index
    %c0_11 = arith.constant 0 : index
    %22 = vector.load %arg11[%c0_10, %c0_11] : memref<16x128xf32, #tpu.memory_space<vmem>>, vector<16x128xf32>
    %23 = arith.truncf %21 : vector<16x256xf32> to vector<16x256xbf16>
    %c0_12 = arith.constant 0 : index
    %c0_13 = arith.constant 0 : index
    %24 = vector.load %arg7[%c0_12, %c0_13] : memref<256x128xbf16, #tpu.memory_space<vmem>>, vector<256x128xbf16>
    %cst_14 = arith.constant dense<0.000000e+00> : vector<16x128xf32>
    %25 = tpu.matmul %23, %24, %cst_14 {dimension_numbers = #tpu.dot_dimension_numbers<[1], [0], [0], [1], [0, 0, 1, 1], [], []>} : vector<16x256xbf16>, vector<256x128xbf16>, vector<16x128xf32> -> vector<16x128xf32>
    %26 = arith.addf %22, %25 : vector<16x128xf32>
    %c0_15 = arith.constant 0 : index
    %c0_16 = arith.constant 0 : index
    %27 = vector.load %arg11[%c0_15, %c0_16] : memref<16x128xf32, #tpu.memory_space<vmem>>, vector<16x128xf32>
    tpu.vector_store %arg11[%c0_15, %c0_16], %26 {strides = array<i32>} : memref<16x128xf32, #tpu.memory_space<vmem>>, vector<16x128xf32>,
    %c0_i32_17 = arith.constant 0 : i32
    %28 = arith.cmpi eq, %arg1, %c0_i32_17 : i32
    %29 = arith.extui %28 : i1 to i32
    %c0_i32_18 = arith.constant 0 : i32
    %30 = arith.cmpi ne, %29, %c0_i32_18 : i32
    scf.if %30 {
      %c0_19 = arith.constant 0 : index
      %c0_20 = arith.constant 0 : index
      %31 = vector.load %arg11[%c0_19, %c0_20] : memref<16x128xf32, #tpu.memory_space<vmem>>, vector<16x128xf32>
      %c0_21 = arith.constant 0 : index
      %c0_22 = arith.constant 0 : index
      %32 = vector.load %arg8[%c0_21, %c0_22] : memref<1x128xf32, #tpu.memory_space<vmem>>, vector<1x128xf32>
      %33 = vector.broadcast %32 : vector<1x128xf32> to vector<16x128xf32>
      %34 = arith.addf %31, %33 : vector<16x128xf32>
      %c0_23 = arith.constant 0 : index
      %c0_24 = arith.constant 0 : index
      %35 = vector.load %arg9[%c0_23, %c0_24] : memref<16x128xf32, #tpu.memory_space<vmem>>, vector<16x128xf32>
      tpu.vector_store %arg9[%c0_23, %c0_24], %34 {strides = array<i32>} : memref<16x128xf32, #tpu.memory_space<vmem>>, vector<16x128xf32>,
    } else {
    }
    return
  }
  func.func @transform_0(%arg0: i32, %arg1: i32) -> (i32, i32) {
    %c0_i32 = arith.constant 0 : i32
    %c0_i32_0 = arith.constant 0 : i32
    return %arg0, %c0_i32 : i32, i32
  }
  func.func @transform_1(%arg0: i32, %arg1: i32) -> (i32, i32) {
    %c0_i32 = arith.constant 0 : i32
    %c0_i32_0 = arith.constant 0 : i32
    %c0_i32_1 = arith.constant 0 : i32
    return %c0_i32, %c0_i32_0 : i32, i32
  }
  func.func @transform_2(%arg0: i32, %arg1: i32) -> (i32, i32) {
    %c0_i32 = arith.constant 0 : i32
    %c0_i32_0 = arith.constant 0 : i32
    %c0_i32_1 = arith.constant 0 : i32
    return %c0_i32, %c0_i32_0 : i32, i32
  }
  func.func @transform_3(%arg0: i32, %arg1: i32) -> (i32, i32) {
    %c0_i32 = arith.constant 0 : i32
    %c0_i32_0 = arith.constant 0 : i32
    %c0_i32_1 = arith.constant 0 : i32
    return %c0_i32, %c0_i32_0 : i32, i32
  }
  func.func @transform_4(%arg0: i32, %arg1: i32) -> (i32, i32) {
    %c0_i32 = arith.constant 0 : i32
    %c0_i32_0 = arith.constant 0 : i32
    %c0_i32_1 = arith.constant 0 : i32
    return %c0_i32, %c0_i32_0 : i32, i32
  }
  func.func @transform_5(%arg0: i32, %arg1: i32) -> (i32, i32) {
    %c0_i32 = arith.constant 0 : i32
    %c0_i32_0 = arith.constant 0 : i32
    %c0_i32_1 = arith.constant 0 : i32
    return %c0_i32, %c0_i32_0 : i32, i32
  }
  func.func @transform_6(%arg0: i32, %arg1: i32) -> (i32, i32) {
    %c0_i32 = arith.constant 0 : i32
    %c0_i32_0 = arith.constant 0 : i32
    %c0_i32_1 = arith.constant 0 : i32
    return %c0_i32, %c0_i32_0 : i32, i32
  }
  func.func @transform_7(%arg0: i32, %arg1: i32) -> (i32, i32) {
    %c0_i32 = arith.constant 0 : i32
    %c0_i32_0 = arith.constant 0 : i32
    return %arg0, %c0_i32 : i32, i32
  }
}

</mosaic_0001>

<llo_original>
// kernel: feed_forward.1
$region0: #{feed_forward.1}
  #allocation0 [shape = 'u32[]', space=smem, size = 0x4, offset = 0x4, fixed_abs, tag = 'smem constant byte address 0x4 - core index']
  #allocation1 [shape = 'u32[144,128]{1,0:T(1,128)}', space=vmem, size = 0x12000, scoped, tag = 'internal scratch']
  #allocation2 [shape = 'bf16[16,128]{1,0:T(16,128)(2,1)}', space=vmem, size = 0x1000, scoped, tag = 'scratch operand']
  #allocation3 [shape = 'f32[16,128]{1,0:T(8,128)}', space=vmem, size = 0x2000, scoped, tag = 'scratch operand']
  %s0 = inlined_call_operand.vmem [shape: f32[32,128], index: 0, kind: input, shape index: {}]
  %s1 = inlined_call_operand.vmem [shape: f32[1,128], index: 1, kind: input, shape index: {}]
  %s2 = inlined_call_operand.vmem [shape: f32[1,128], index: 2, kind: input, shape index: {}]
  %s3 = inlined_call_operand.vmem [shape: bf16[128,256], index: 3, kind: input, shape index: {}]
  %s4 = inlined_call_operand.vmem [shape: f32[1,256], index: 4, kind: input, shape index: {}]
  %s5 = inlined_call_operand.vmem [shape: bf16[256,128], index: 5, kind: input, shape index: {}]
  %s6 = inlined_call_operand.vmem [shape: f32[1,128], index: 6, kind: input, shape index: {}]
  %s7 = inlined_call_operand.hbm [shape: f32[32,128], index: 7, kind: output, shape index: {}]
  %s8 = sld [smem:[#allocation0]]
  $region69: #{feed_forward.1} parent=0
    _
  %s10 = ssub.s32 1, %s8
  %s11 = scalar_select 0, %s10, %s8
  $region1: #{feed_forward.1} parent=0
    #allocation4 [shape = 'u8[16384]{0}', space=vmem, size = 0x4000, scoped, tag = 'output window, operand 0']
    #allocation5 [shape = 's32[2]{0}', space=sflag, size = 0x8, scoped, tag = 'scoped memory for feed_forward.1']
    %12 = vsyncpa [#allocation5], 0
    %s13 = scalar_lea.sflag [#allocation5], 1
    %14 = vsyncpa %s13, 0
    loop: start=0, step=1, limit=4
    $region2: #{feed_forward.1} parent=1 // loop_pre_header
      _
    $region3: #{feed_forward.1} parent=1 // loop_header
      %s16 = sphi 0, %s20
      %p17 = scmp.ge.s32.totalorder %s16, 4
      %s23 = sphi 0, %s35
      %s24 = sphi 0, %s31
      %s25 = sphi 0, %s23
      %s26 = sphi 0, %s24
      %s27 = sphi 0, %s25
      %s28 = sphi 0, %s26
      %s38 = sphi 0, %s40
      %s41 = sphi 0, %s38
      %s42 = sphi 0, %s41
      %s58 = sphi 0, %s42
      %s62 = sphi 0, %s62
      %s64 = sphi 0, %s62
      %s65 = sphi 0, %s64
      %s79 = sphi 0, %s65
      %s83 = sphi 0, %s83
      %s85 = sphi 0, %s83
      %s86 = sphi 0, %s85
      %s100 = sphi 0, %s86
      %s104 = sphi 0, %s104
      %s106 = sphi 0, %s104
      %s107 = sphi 0, %s106
      %s121 = sphi 0, %s107
      %s125 = sphi 0, %s125
      %s127 = sphi 0, %s125
      %s128 = sphi 0, %s127
      %s142 = sphi 0, %s128
      %s146 = sphi 0, %s146
      %s148 = sphi 0, %s146
      %s149 = sphi 0, %s148
      %s163 = sphi 0, %s149
      %s167 = sphi 0, %s167
      %s169 = sphi 0, %s167
      %s170 = sphi 0, %s169
      %s184 = sphi 0, %s170
      %s190 = sphi 0, %s192
      %s193 = sphi 0, %s190
      %s194 = sphi 0, %s193
      %s210 = sphi 0, %s194
    $region4: #{feed_forward.1} parent=1 // loop_header_branch
      %19 = sbr.rel (%p17) target = $region8
    $region5: #{feed_forward.1} parent=1 // loop_body
      %s21 = ssub.s32 %s16, 1
      %s22 = ssub.s32 %s16, 2
      %s29 = sadd.s32 1, %s24
      %p30 = scmp.ge.s32.totalorder %s29, 1
      %s31 = scalar_select %p30, 0, %s29
      %s32 = sadd.s32 1, %s23
      %s33 = scalar_select %p30, %s32, %s23
      %p34 = scmp.ge.s32.totalorder %s33, 2
      %s35 = scalar_select %p34, 0, %s33
      %s36 = ssub.s32 %s23, %s35
      %p37 = scmp.eq.s32.totalorder %s36, 0
      %s39 = sadd.s32 %s38, 1
      %s40 = scalar_select %p37, %s38, %s39
      %p43 = pneg %p37
      %p44 = scmp.eq.s32.totalorder %s16, 1
      %p45 = por %p43, %p44
      %p46 = scmp.ne.s32.totalorder %s38, %s41
      %p47 = scmp.eq.s32.totalorder %s16, 0
      %p48 = por %p46, %p47
      %p49 = scmp.ne.s32.totalorder %s38, %s41
      %p50 = scmp.eq.s32.totalorder %s21, 1
      %p51 = por %p49, %p50
      %p52 = scmp.ne.s32.totalorder %s41, %s42
      %p53 = scmp.eq.s32.totalorder %s21, 0
      %p54 = por %p52, %p53
      %p55 = scmp.ne.s32.totalorder %s41, %s42
      %p56 = scmp.eq.s32.totalorder %s22, 1
      %p57 = por %p55, %p56
      %p59 = scmp.ne.s32.totalorder %s42, %s58
      %p60 = scmp.eq.s32.totalorder %s22, 0
      %p61 = por %p59, %p60
      %s63 = sadd.s32 %s62, 1
      %p66 = scmp.eq.s32.totalorder %s16, 1
      %p67 = scmp.ne.s32.totalorder %s62, %s64
      %p68 = scmp.eq.s32.totalorder %s16, 0
      %p69 = por %p67, %p68
      %p70 = scmp.ne.s32.totalorder %s62, %s64
      %p71 = scmp.eq.s32.totalorder %s21, 1
      %p72 = por %p70, %p71
      %p73 = scmp.ne.s32.totalorder %s64, %s65
      %p74 = scmp.eq.s32.totalorder %s21, 0
      %p75 = por %p73, %p74
      %p76 = scmp.ne.s32.totalorder %s64, %s65
      %p77 = scmp.eq.s32.totalorder %s22, 1
      %p78 = por %p76, %p77
      %p80 = scmp.ne.s32.totalorder %s65, %s79
      %p81 = scmp.eq.s32.totalorder %s22, 0
      %p82 = por %p80, %p81
      %s84 = sadd.s32 %s83, 1
      %p87 = scmp.eq.s32.totalorder %s16, 1
      %p88 = scmp.ne.s32.totalorder %s83, %s85
      %p89 = scmp.eq.s32.totalorder %s16, 0
      %p90 = por %p88, %p89
      %p91 = scmp.ne.s32.totalorder %s83, %s85
      %p92 = scmp.eq.s32.totalorder %s21, 1
      %p93 = por %p91, %p92
      %p94 = scmp.ne.s32.totalorder %s85, %s86
      %p95 = scmp.eq.s32.totalorder %s21, 0
      %p96 = por %p94, %p95
      %p97 = scmp.ne.s32.totalorder %s85, %s86
      %p98 = scmp.eq.s32.totalorder %s22, 1
      %p99 = por %p97, %p98
      %p101 = scmp.ne.s32.totalorder %s86, %s100
      %p102 = scmp.eq.s32.totalorder %s22, 0
      %p103 = por %p101, %p102
      %s105 = sadd.s32 %s104, 1
      %p108 = scmp.eq.s32.totalorder %s16, 1
      %p109 = scmp.ne.s32.totalorder %s104, %s106
      %p110 = scmp.eq.s32.totalorder %s16, 0
      %p111 = por %p109, %p110
      %p112 = scmp.ne.s32.totalorder %s104, %s106
      %p113 = scmp.eq.s32.totalorder %s21, 1
      %p114 = por %p112, %p113
      %p115 = scmp.ne.s32.totalorder %s106, %s107
      %p116 = scmp.eq.s32.totalorder %s21, 0
      %p117 = por %p115, %p116
      %p118 = scmp.ne.s32.totalorder %s106, %s107
      %p119 = scmp.eq.s32.totalorder %s22, 1
      %p120 = por %p118, %p119
      %p122 = scmp.ne.s32.totalorder %s107, %s121
      %p123 = scmp.eq.s32.totalorder %s22, 0
      %p124 = por %p122, %p123
      %s126 = sadd.s32 %s125, 1
      %p129 = scmp.eq.s32.totalorder %s16, 1
      %p130 = scmp.ne.s32.totalorder %s125, %s127
      %p131 = scmp.eq.s32.totalorder %s16, 0
      %p132 = por %p130, %p131
      %p133 = scmp.ne.s32.totalorder %s125, %s127
      %p134 = scmp.eq.s32.totalorder %s21, 1
      %p135 = por %p133, %p134
      %p136 = scmp.ne.s32.totalorder %s127, %s128
      %p137 = scmp.eq.s32.totalorder %s21, 0
      %p138 = por %p136, %p137
      %p139 = scmp.ne.s32.totalorder %s127, %s128
      %p140 = scmp.eq.s32.totalorder %s22, 1
      %p141 = por %p139, %p140
      %p143 = scmp.ne.s32.totalorder %s128, %s142
      %p144 = scmp.eq.s32.totalorder %s22, 0
      %p145 = por %p143, %p144
      %s147 = sadd.s32 %s146, 1
      %p150 = scmp.eq.s32.totalorder %s16, 1
      %p151 = scmp.ne.s32.totalorder %s146, %s148
      %p152 = scmp.eq.s32.totalorder %s16, 0
      %p153 = por %p151, %p152
      %p154 = scmp.ne.s32.totalorder %s146, %s148
      %p155 = scmp.eq.s32.totalorder %s21, 1
      %p156 = por %p154, %p155
      %p157 = scmp.ne.s32.totalorder %s148, %s149
      %p158 = scmp.eq.s32.totalorder %s21, 0
      %p159 = por %p157, %p158
      %p160 = scmp.ne.s32.totalorder %s148, %s149
      %p161 = scmp.eq.s32.totalorder %s22, 1
      %p162 = por %p160, %p161
      %p164 = scmp.ne.s32.totalorder %s149, %s163
      %p165 = scmp.eq.s32.totalorder %s22, 0
      %p166 = por %p164, %p165
      %s168 = sadd.s32 %s167, 1
      %p171 = scmp.eq.s32.totalorder %s16, 1
      %p172 = scmp.ne.s32.totalorder %s167, %s169
      %p173 = scmp.eq.s32.totalorder %s16, 0
      %p174 = por %p172, %p173
      %p175 = scmp.ne.s32.totalorder %s167, %s169
      %p176 = scmp.eq.s32.totalorder %s21, 1
      %p177 = por %p175, %p176
      %p178 = scmp.ne.s32.totalorder %s169, %s170
      %p179 = scmp.eq.s32.totalorder %s21, 0
      %p180 = por %p178, %p179
      %p181 = scmp.ne.s32.totalorder %s169, %s170
      %p182 = scmp.eq.s32.totalorder %s22, 1
      %p183 = por %p181, %p182
      %p185 = scmp.ne.s32.totalorder %s170, %s184
      %p186 = scmp.eq.s32.totalorder %s22, 0
      %p187 = por %p185, %p186
      %s188 = ssub.s32 %s23, %s35
      %p189 = scmp.eq.s32.totalorder %s188, 0
      %s191 = sadd.s32 %s190, 1
      %s192 = scalar_select %p189, %s190, %s191
      %p195 = pneg %p189
      %p196 = scmp.eq.s32.totalorder %s16, 1
      %p197 = por %p195, %p196
      %p198 = scmp.ne.s32.totalorder %s190, %s193
      %p199 = scmp.eq.s32.totalorder %s16, 0
      %p200 = por %p198, %p199
      %p201 = scmp.ne.s32.totalorder %s190, %s193
      %p202 = scmp.eq.s32.totalorder %s21, 1
      %p203 = por %p201, %p202
      %p204 = scmp.ne.s32.totalorder %s193, %s194
      %p205 = scmp.eq.s32.totalorder %s21, 0
      %p206 = por %p204, %p205
      %p207 = scmp.ne.s32.totalorder %s193, %s194
      %p208 = scmp.eq.s32.totalorder %s22, 1
      %p209 = por %p207, %p208
      %p211 = scmp.ne.s32.totalorder %s194, %s210
      %p212 = scmp.eq.s32.totalorder %s22, 0
      %p213 = por %p211, %p212
      %p214 = scmp.le.s32.totalorder 1, %s16
      %p215 = scmp.lt.s32.totalorder %s16, 3
      %p216 = pnand %p214, %p215
      %p217 = pneg %p216
      // Predicated region
      $region9: #{feed_forward.1} parent=5 // pred_check
        _
      $region10: #{feed_forward.1} parent=5 // pred_check_branch
        %219 = sbr.rel (%p216) target = $region12
      $region11: #{feed_forward.1} parent=5 // pred_region
        %s220 = ssub.s32 %s16, 1
        // Predicated region
        $region13: #{feed_forward.1} parent=11 // pred_check
          %p221 = pneg %p75
        $region14: #{feed_forward.1} parent=11 // pred_check_branch
          %223 = sbr.rel (%p221) target = $region16
        $region15: #{feed_forward.1} parent=11 // pred_region
          _
        $region16: #{feed_forward.1} parent=11 // pred_fallthru
          _
        // Predicated region
        $region17: #{feed_forward.1} parent=11 // pred_check
          %p224 = pneg %p96
        $region18: #{feed_forward.1} parent=11 // pred_check_branch
          %226 = sbr.rel (%p224) target = $region20
        $region19: #{feed_forward.1} parent=11 // pred_region
          _
        $region20: #{feed_forward.1} parent=11 // pred_fallthru
          _
        // Predicated region
        $region21: #{feed_forward.1} parent=11 // pred_check
          %p227 = pneg %p117
        $region22: #{feed_forward.1} parent=11 // pred_check_branch
          %229 = sbr.rel (%p227) target = $region24
        $region23: #{feed_forward.1} parent=11 // pred_region
          _
        $region24: #{feed_forward.1} parent=11 // pred_fallthru
          _
        // Predicated region
        $region25: #{feed_forward.1} parent=11 // pred_check
          %p230 = pneg %p138
        $region26: #{feed_forward.1} parent=11 // pred_check_branch
          %232 = sbr.rel (%p230) target = $region28
        $region27: #{feed_forward.1} parent=11 // pred_region
          _
        $region28: #{feed_forward.1} parent=11 // pred_fallthru
          _
        // Predicated region
        $region29: #{feed_forward.1} parent=11 // pred_check
          %p233 = pneg %p159
        $region30: #{feed_forward.1} parent=11 // pred_check_branch
          %235 = sbr.rel (%p233) target = $region32
        $region31: #{feed_forward.1} parent=11 // pred_region
          _
        $region32: #{feed_forward.1} parent=11 // pred_fallthru
          _
        // Predicated region
        $region33: #{feed_forward.1} parent=11 // pred_check
          %p236 = pneg %p180
        $region34: #{feed_forward.1} parent=11 // pred_check_branch
          %238 = sbr.rel (%p236) target = $region36
        $region35: #{feed_forward.1} parent=11 // pred_region
          _
        $region36: #{feed_forward.1} parent=11 // pred_fallthru
          _
      $region12: #{feed_forward.1} parent=5 // pred_fallthru
        _
      %p239 = scmp.lt.s32.totalorder %s16, 2
      // Predicated region
      $region37: #{feed_forward.1} parent=5 // pred_check
        %p240 = pneg %p239
      $region38: #{feed_forward.1} parent=5 // pred_check_branch
        %242 = sbr.rel (%p240) target = $region40
      $region39: #{feed_forward.1} parent=5 // pred_region
        // Predicated region
        $region41: #{feed_forward.1} parent=39 // pred_check
          %p243 = pneg %p48
        $region42: #{feed_forward.1} parent=39 // pred_check_branch
          %245 = sbr.rel (%p243) target = $region44
        $region43: #{feed_forward.1} parent=39 // pred_region
          %s246 = smul.u32 2, %s23
          %p247 = scmp.lt.s32.totalorder %s246, 3
          %s248 = scalar_select %p247, %s246, 3
          %s249 = smul.addr %s248, 8
          %s250 = scalar_lea.vmem %s0, %s249
          %s251 = smul.u32 2, %s23
        $region44: #{feed_forward.1} parent=39 // pred_fallthru
          _
      $region40: #{feed_forward.1} parent=5 // pred_fallthru
        _
      %p252 = scmp.le.s32.totalorder 1, %s16
      %p253 = scmp.lt.s32.totalorder %s16, 3
      %p254 = pnand %p252, %p253
      %p255 = pneg %p254
      // Predicated region
      $region45: #{feed_forward.1} parent=5 // pred_check
        _
      $region46: #{feed_forward.1} parent=5 // pred_check_branch
        %257 = sbr.rel (%p254) target = $region48
      $region47: #{feed_forward.1} parent=5 // pred_region
        %s258 = ssub.s32 %s16, 1
        %s259 = smul.u32 2, %s25
        %p260 = scmp.lt.s32.totalorder %s259, 3
        %s261 = scalar_select %p260, %s259, 3
        %s262 = smul.addr %s261, 8
        %s263 = scalar_lea.vmem %s0, %s262
        %p264 = pneg %p54
        %p265 = pneg %p51
        %p266 = pneg %p75
        %p267 = pneg %p72
        %p268 = pneg %p96
        %p269 = pneg %p93
        %p270 = pneg %p117
        %p271 = pneg %p114
        %p272 = pneg %p138
        %p273 = pneg %p135
        %p274 = pneg %p159
        %p275 = pneg %p156
        %p276 = pneg %p180
        %p277 = pneg %p177
        %p278 = pneg %p206
        %p279 = pneg %p203
        %s280 = sand.u32 %s193, 1
        %s281 = scalar_lea.sflag [#allocation5], %s280
        %s282 = sand.u32 %s193, 1
        %s283 = smul.addr %s282, 16
        %s284 = scalar_lea.vmem [#allocation4], %s283
        %s285 = smul.u32 2, %s25
        %p286 = scmp.lt.s32.totalorder %s285, 3
        %s287 = scalar_select %p286, %s285, 3
        %s288 = smul.addr %s287, 8
        %s289 = scalar_lea.vmem %s0, %s288
        %s290 = smul.u32 2, %s25
        %s291 = smul.u32 2, %s25
        %p293 = scmp.eq.s32.totalorder %s26, 0
        // Predicated region
        $region49: #{feed_forward.1} parent=47 // pred_check
          %p294 = pneg %p293
        $region50: #{feed_forward.1} parent=47 // pred_check_branch
          %296 = sbr.rel (%p294) target = $region52
        $region51: #{feed_forward.1} parent=47 // pred_region
          %v297 = vld [vmem:[%s289] sm:$0xff]
          %v298 = vld [vmem:[%s289 + $0x8] sm:$0xff]
          %299 = vadd.xlane.f32.xlu0 %v297
          %v300 = vpop.xlane.xlu0 %299
          %301 = vadd.xlane.f32.xlu0 %v298
          %v302 = vpop.xlane.xlu0 %301
          %v303 = vrcp.pop 128.0
          %v304 = vmul.f32 %v300, %v303
          %v305 = vmul.f32 %v302, %v303
          %v306 = vsub.f32 %v297, %v304
          %v307 = vsub.f32 %v298, %v305
          %v308 = vmul.f32 %v306, %v306
          %v309 = vmul.f32 %v307, %v307
          %310 = vadd.xlane.f32.xlu0 %v308
          %v311 = vpop.xlane.xlu0 %310
          %312 = vadd.xlane.f32.xlu0 %v309
          %v313 = vpop.xlane.xlu0 %312
          %v314 = vmul.f32 %v311, %v303
          %v315 = vmul.f32 %v313, %v303
          %v316 = vadd.f32 %v314, 1e-05
          %v317 = vadd.f32 %v315, 1e-05
          %v318 = vrsqrt.pop %v316
          %v319 = vrsqrt.pop %v317
          %v320 = vmul.f32 %v306, %v318
          %v321 = vmul.f32 %v307, %v319
          %v322 = vld [vmem:[%s1] sm:$0x1]
          %v324 = vlaneseq
          %v325 = vshrl.u32 %v324, 7
          %v326 = vsub.s32 0, %v325
          %v327 = vrot.slane %v322, %v326
          %v329 = vmul.f32 %v320, %v327
          %v330 = vmul.f32 %v321, %v327
          %v331 = vld [vmem:[%s2] sm:$0x1]
          %v333 = vlaneseq
          %v334 = vshrl.u32 %v333, 7
          %v335 = vsub.s32 0, %v334
          %v336 = vrot.slane %v331, %v335
          %v338 = vadd.f32 %v329, %v336
          %v339 = vadd.f32 %v330, %v336
          %v340 = vpack.c.bf16 %v339, %v338
          %341 = vst [vmem:[#allocation2] sm:$0xff] %v340
          %342 = vst [vmem:[#allocation3] sm:$0xff] 0.0
          %343 = vst [vmem:[#allocation3 + $0x8] sm:$0xff] 0.0
        $region52: #{feed_forward.1} parent=47 // pred_fallthru
          _
        %v344 = vld [vmem:[#allocation2] sm:$0xff]
        %v345 = vld [vmem:[%s3] sm:$0xff]
        %v346 = vld [vmem:[%s3 + $0x8] sm:$0xff]
        %v347 = vld [vmem:[%s3 + $0x10] sm:$0xff]
        %v348 = vld [vmem:[%s3 + $0x18] sm:$0xff]
        %v349 = vld [vmem:[%s3 + $0x20] sm:$0xff]
        %v350 = vld [vmem:[%s3 + $0x28] sm:$0xff]
        %v351 = vld [vmem:[%s3 + $0x30] sm:$0xff]
        %v352 = vld [vmem:[%s3 + $0x38] sm:$0xff]
        %v353 = vld [vmem:[%s3 + $0x40] sm:$0xff]
        %v354 = vld [vmem:[%s3 + $0x48] sm:$0xff]
        %v355 = vld [vmem:[%s3 + $0x50] sm:$0xff]
        %v356 = vld [vmem:[%s3 + $0x58] sm:$0xff]
        %v357 = vld [vmem:[%s3 + $0x60] sm:$0xff]
        %v358 = vld [vmem:[%s3 + $0x68] sm:$0xff]
        %v359 = vld [vmem:[%s3 + $0x70] sm:$0xff]
        %v360 = vld [vmem:[%s3 + $0x78] sm:$0xff]
        %v361 = vld [vmem:[%s4] sm:$0x3]
        %v363 = vlaneseq
        %v364 = vshrl.u32 %v363, 7
        %v365 = vsub.s32 0, %v364
        %v366 = vrot.slane %v361, %v365
        %v367 = vlaneseq
        %v368 = vshrl.u32 %v367, 7
        %v369 = vsub.s32 1, %v368
        %v370 = vrot.slane %v361, %v369
        %v389 = vunpack.c.l.b16 %v345
        %v390 = vunpack.c.h.b16 %v345
        %v391 = vunpack.c.l.b16 %v346
        %v392 = vunpack.c.h.b16 %v346
        %v393 = vunpack.c.l.b16 %v347
        %v394 = vunpack.c.h.b16 %v347
        %v395 = vunpack.c.l.b16 %v348
        %v396 = vunpack.c.h.b16 %v348
        %v397 = vunpack.c.l.b16 %v349
        %v398 = vunpack.c.h.b16 %v349
        %v399 = vunpack.c.l.b16 %v350
        %v400 = vunpack.c.h.b16 %v350
        %v401 = vunpack.c.l.b16 %v351
        %v402 = vunpack.c.h.b16 %v351
        %v403 = vunpack.c.l.b16 %v352
        %v404 = vunpack.c.h.b16 %v352
        %v405 = vunpack.c.l.b16 %v353
        %v406 = vunpack.c.h.b16 %v353
        %v407 = vunpack.c.l.b16 %v354
        %v408 = vunpack.c.h.b16 %v354
        %v409 = vunpack.c.l.b16 %v355
        %v410 = vunpack.c.h.b16 %v355
        %v411 = vunpack.c.l.b16 %v356
        %v412 = vunpack.c.h.b16 %v356
        %v413 = vunpack.c.l.b16 %v357
        %v414 = vunpack.c.h.b16 %v357
        %v415 = vunpack.c.l.b16 %v358
        %v416 = vunpack.c.h.b16 %v358
        %v417 = vunpack.c.l.b16 %v359
        %v418 = vunpack.c.h.b16 %v359
        %v419 = vunpack.c.l.b16 %v360
        %v420 = vunpack.c.h.b16 %v360
        %v421 = vpack.c.b16 %v391, %v389
        %v422 = vpack.c.b16 %v392, %v390
        %v423 = vpack.c.b16 %v395, %v393
        %v424 = vpack.c.b16 %v396, %v394
        %v425 = vpack.c.b16 %v399, %v397
        %v426 = vpack.c.b16 %v400, %v398
        %v427 = vpack.c.b16 %v403, %v401
        %v428 = vpack.c.b16 %v404, %v402
        %v429 = vpack.c.b16 %v407, %v405
        %v430 = vpack.c.b16 %v408, %v406
        %v431 = vpack.c.b16 %v411, %v409
        %v432 = vpack.c.b16 %v412, %v410
        %v433 = vpack.c.b16 %v415, %v413
        %v434 = vpack.c.b16 %v416, %v414
        %v435 = vpack.c.b16 %v419, %v417
        %v436 = vpack.c.b16 %v420, %v418
        %453 = vmatprep.subr.bf16.mxu0 %v422
        %454 = vmatpush1.bf16.msra.mxu0 %v421
        %455 = vmatprep.subr.bf16.mxu0 %v424
        %456 = vmatpush1.bf16.msra.mxu0 %v423
        %457 = vmatprep.subr.bf16.mxu0 %v426
        %458 = vmatpush1.bf16.msra.mxu0 %v425
        %459 = vmatprep.subr.bf16.mxu0 %v428
        %460 = vmatpush1.bf16.msra.mxu0 %v427
        %461 = vmatprep.subr.bf16.mxu0 %v430
        %462 = vmatpush1.bf16.msra.mxu0 %v429
        %463 = vmatprep.subr.bf16.mxu0 %v432
        %464 = vmatpush1.bf16.msra.mxu0 %v431
        %465 = vmatprep.subr.bf16.mxu0 %v434
        %466 = vmatpush1.bf16.msra.mxu0 %v433
        %467 = vmatprep.subr.bf16.mxu0 %v436
        %468 = vmatpush1.bf16.msra.mxu0 %v435
        %469 = vmatprep.subr.bf16.mxu0 0
        %470 = vmatpush1.bf16.msra.mxu0 0
        %471 = vmatprep.subr.bf16.mxu0 0
        %472 = vmatpush1.bf16.msra.mxu0 0
        %473 = vmatprep.subr.bf16.mxu0 0
        %474 = vmatpush1.bf16.msra.mxu0 0
        %475 = vmatprep.subr.bf16.mxu0 0
        %476 = vmatpush1.bf16.msra.mxu0 0
        %477 = vmatprep.subr.bf16.mxu0 0
        %478 = vmatpush1.bf16.msra.mxu0 0
        %479 = vmatprep.subr.bf16.mxu0 0
        %480 = vmatpush1.bf16.msra.mxu0 0
        %481 = vmatprep.subr.bf16.mxu0 0
        %482 = vmatpush1.bf16.msra.mxu0 0
        %483 = vmatprep.subr.bf16.mxu0 0
        %484 = vmatpush1.bf16.msra.mxu0 0
        %485 = vmatprep.mubr.bf16.mxu0 0
        %486 = vmatmul.mubr.bf16.gmra.mrb[0].mxu0 %v344
        %v487 = vpop.f32.mrb[0].mxu0
        %v488 = vadd.f32 %v366, %v487
        %v489 = vpop.f32.mrb[0].mxu0
        %v490 = vadd.f32 %v370, %v489
        %v491 = vpop.f32.mrb[0].mxu0
        %v492 = vadd.f32 %v366, %v491
        %v493 = vpop.f32.mrb[0].mxu0
        %v494 = vadd.f32 %v370, %v493
        %495 = vdwg.mxu0
        %v496 = vmul.f32 %v488, %v488
        %v497 = vmul.f32 %v490, %v490
        %v498 = vmul.f32 %v492, %v492
        %v499 = vmul.f32 %v494, %v494
        %v500 = vmul.f32 %v488, %v496
        %v501 = vmul.f32 %v490, %v497
        %v502 = vmul.f32 %v492, %v498
        %v503 = vmul.f32 %v494, %v499
        %v504 = vmul.f32 %v500, 0.044715
        %v505 = vmul.f32 %v501, 0.044715
        %v506 = vmul.f32 %v502, 0.044715
        %v507 = vmul.f32 %v503, 0.044715
        %v508 = vadd.f32 %v488, %v504
        %v509 = vadd.f32 %v490, %v505
        %v510 = vadd.f32 %v492, %v506
        %v511 = vadd.f32 %v494, %v507
        %v512 = vmul.f32 %v508, 0.7978846
        %v513 = vmul.f32 %v509, 0.7978846
        %v514 = vmul.f32 %v510, 0.7978846
        %v515 = vmul.f32 %v511, 0.7978846
        %v516 = vtanh.pop %v512
        %v517 = vtanh.pop %v513
        %v518 = vtanh.pop %v514
        %v519 = vtanh.pop %v515
        %v520 = vadd.f32 %v516, 1.0
        %v521 = vadd.f32 %v517, 1.0
        %v522 = vadd.f32 %v518, 1.0
        %v523 = vadd.f32 %v519, 1.0
        %v524 = vmul.f32 %v520, 0.5
        %v525 = vmul.f32 %v521, 0.5
        %v526 = vmul.f32 %v522, 0.5
        %v527 = vmul.f32 %v523, 0.5
        %v528 = vmul.f32 %v488, %v524
        %v529 = vmul.f32 %v490, %v525
        %v530 = vmul.f32 %v492, %v526
        %v531 = vmul.f32 %v494, %v527
        %v532 = vld [vmem:[#allocation3] sm:$0xff]
        %v533 = vld [vmem:[#allocation3 + $0x8] sm:$0xff]
        %v534 = vpack.c.bf16 %v530, %v528
        %v535 = vpack.c.bf16 %v531, %v529
        %v536 = vld [vmem:[%s5] sm:$0xf]
        %v537 = vld [vmem:[%s5 + $0x4] sm:$0xf]
        %v538 = vld [vmem:[%s5 + $0x8] sm:$0xf]
        %v539 = vld [vmem:[%s5 + $0xc] sm:$0xf]
        %v540 = vld [vmem:[%s5 + $0x10] sm:$0xf]
        %v541 = vld [vmem:[%s5 + $0x14] sm:$0xf]
        %v542 = vld [vmem:[%s5 + $0x18] sm:$0xf]
        %v543 = vld [vmem:[%s5 + $0x1c] sm:$0xf]
        %v544 = vld [vmem:[%s5 + $0x20] sm:$0xf]
        %v545 = vld [vmem:[%s5 + $0x24] sm:$0xf]
        %v546 = vld [vmem:[%s5 + $0x28] sm:$0xf]
        %v547 = vld [vmem:[%s5 + $0x2c] sm:$0xf]
        %v548 = vld [vmem:[%s5 + $0x30] sm:$0xf]
        %v549 = vld [vmem:[%s5 + $0x34] sm:$0xf]
        %v550 = vld [vmem:[%s5 + $0x38] sm:$0xf]
        %v551 = vld [vmem:[%s5 + $0x3c] sm:$0xf]
        %v552 = vld [vmem:[%s5 + $0x40] sm:$0xf]
        %v553 = vld [vmem:[%s5 + $0x44] sm:$0xf]
        %v554 = vld [vmem:[%s5 + $0x48] sm:$0xf]
        %v555 = vld [vmem:[%s5 + $0x4c] sm:$0xf]
        %v556 = vld [vmem:[%s5 + $0x50] sm:$0xf]
        %v557 = vld [vmem:[%s5 + $0x54] sm:$0xf]
        %v558 = vld [vmem:[%s5 + $0x58] sm:$0xf]
        %v559 = vld [vmem:[%s5 + $0x5c] sm:$0xf]
        %v560 = vld [vmem:[%s5 + $0x60] sm:$0xf]
        %v561 = vld [vmem:[%s5 + $0x64] sm:$0xf]
        %v562 = vld [vmem:[%s5 + $0x68] sm:$0xf]
        %v563 = vld [vmem:[%s5 + $0x6c] sm:$0xf]
        %v564 = vld [vmem:[%s5 + $0x70] sm:$0xf]
        %v565 = vld [vmem:[%s5 + $0x74] sm:$0xf]
        %v566 = vld [vmem:[%s5 + $0x78] sm:$0xf]
        %v567 = vld [vmem:[%s5 + $0x7c] sm:$0xf]
        %v600 = vunpack.c.l.b16 %v536
        %v601 = vunpack.c.l.b16 %v537
        %v602 = vunpack.c.l.b16 %v538
        %v603 = vunpack.c.l.b16 %v539
        %v604 = vunpack.c.l.b16 %v540
        %v605 = vunpack.c.l.b16 %v541
        %v606 = vunpack.c.l.b16 %v542
        %v607 = vunpack.c.l.b16 %v543
        %v608 = vunpack.c.l.b16 %v544
        %v609 = vunpack.c.l.b16 %v545
        %v610 = vunpack.c.l.b16 %v546
        %v611 = vunpack.c.l.b16 %v547
        %v612 = vunpack.c.l.b16 %v548
        %v613 = vunpack.c.l.b16 %v549
        %v614 = vunpack.c.l.b16 %v550
        %v615 = vunpack.c.l.b16 %v551
        %v616 = vunpack.c.l.b16 %v552
        %v617 = vunpack.c.l.b16 %v553
        %v618 = vunpack.c.l.b16 %v554
        %v619 = vunpack.c.l.b16 %v555
        %v620 = vunpack.c.l.b16 %v556
        %v621 = vunpack.c.l.b16 %v557
        %v622 = vunpack.c.l.b16 %v558
        %v623 = vunpack.c.l.b16 %v559
        %v624 = vunpack.c.l.b16 %v560
        %v625 = vunpack.c.l.b16 %v561
        %v626 = vunpack.c.l.b16 %v562
        %v627 = vunpack.c.l.b16 %v563
        %v628 = vunpack.c.l.b16 %v564
        %v629 = vunpack.c.l.b16 %v565
        %v630 = vunpack.c.l.b16 %v566
        %v631 = vunpack.c.l.b16 %v567
        %v632 = vpack.c.b16 %v601, %v600
        %v633 = vpack.c.b16 %v603, %v602
        %v634 = vpack.c.b16 %v605, %v604
        %v635 = vpack.c.b16 %v607, %v606
        %v636 = vpack.c.b16 %v609, %v608
        %v637 = vpack.c.b16 %v611, %v610
        %v638 = vpack.c.b16 %v613, %v612
        %v639 = vpack.c.b16 %v615, %v614
        %v640 = vpack.c.b16 %v617, %v616
        %v641 = vpack.c.b16 %v619, %v618
        %v642 = vpack.c.b16 %v621, %v620
        %v643 = vpack.c.b16 %v623, %v622
        %v644 = vpack.c.b16 %v625, %v624
        %v645 = vpack.c.b16 %v627, %v626
        %v646 = vpack.c.b16 %v629, %v628
        %v647 = vpack.c.b16 %v631, %v630
        %664 = vmatprep.subr.bf16.mxu0 0
        %665 = vmatpush1.bf16.msra.mxu0 %v632
        %666 = vmatprep.subr.bf16.mxu0 0
        %667 = vmatpush1.bf16.msra.mxu0 %v633
        %668 = vmatprep.subr.bf16.mxu0 0
        %669 = vmatpush1.bf16.msra.mxu0 %v634
        %670 = vmatprep.subr.bf16.mxu0 0
        %671 = vmatpush1.bf16.msra.mxu0 %v635
        %672 = vmatprep.subr.bf16.mxu0 0
        %673 = vmatpush1.bf16.msra.mxu0 %v636
        %674 = vmatprep.subr.bf16.mxu0 0
        %675 = vmatpush1.bf16.msra.mxu0 %v637
        %676 = vmatprep.subr.bf16.mxu0 0
        %677 = vmatpush1.bf16.msra.mxu0 %v638
        %678 = vmatprep.subr.bf16.mxu0 0
        %679 = vmatpush1.bf16.msra.mxu0 %v639
        %680 = vmatprep.subr.bf16.mxu0 0
        %681 = vmatpush1.bf16.msra.mxu0 %v640
        %682 = vmatprep.subr.bf16.mxu0 0
        %683 = vmatpush1.bf16.msra.mxu0 %v641
        %684 = vmatprep.subr.bf16.mxu0 0
        %685 = vmatpush1.bf16.msra.mxu0 %v642
        %686 = vmatprep.subr.bf16.mxu0 0
        %687 = vmatpush1.bf16.msra.mxu0 %v643
        %688 = vmatprep.subr.bf16.mxu0 0
        %689 = vmatpush1.bf16.msra.mxu0 %v644
        %690 = vmatprep.subr.bf16.mxu0 0
        %691 = vmatpush1.bf16.msra.mxu0 %v645
        %692 = vmatprep.subr.bf16.mxu0 0
        %693 = vmatpush1.bf16.msra.mxu0 %v646
        %694 = vmatprep.subr.bf16.mxu0 0
        %695 = vmatpush1.bf16.msra.mxu0 %v647
        %696 = vmatprep.mubr.bf16.mxu0 %v535
        %697 = vmatmul.mubr.bf16.gmra.mrb[0].mxu0 %v534
        %v698 = vpop.f32.mrb[0].mxu0
        %v699 = vadd.f32 0.0, %v698
        %v700 = vpop.f32.mrb[0].mxu0
        %v701 = vpop.f32.mrb[0].mxu0
        %v702 = vadd.f32 0.0, %v701
        %v703 = vpop.f32.mrb[0].mxu0
        %704 = vdwg.mxu0
        %v705 = vadd.f32 %v532, %v699
        %v706 = vadd.f32 %v533, %v702
        %707 = vst [vmem:[#allocation3] sm:$0xff] %v705
        %708 = vst [vmem:[#allocation3 + $0x8] sm:$0xff] %v706
        // Predicated region
        $region53: #{feed_forward.1} parent=47 // pred_check
          %p709 = pneg %p293
        $region54: #{feed_forward.1} parent=47 // pred_check_branch
          %711 = sbr.rel (%p709) target = $region56
        $region55: #{feed_forward.1} parent=47 // pred_region
          %v712 = vld [vmem:[#allocation3] sm:$0xff]
          %v713 = vld [vmem:[#allocation3 + $0x8] sm:$0xff]
          %v714 = vld [vmem:[%s6] sm:$0x1]
          %v716 = vlaneseq
          %v717 = vshrl.u32 %v716, 7
          %v718 = vsub.s32 0, %v717
          %v719 = vrot.slane %v714, %v718
          %v721 = vadd.f32 %v712, %v719
          %v722 = vadd.f32 %v713, %v719
          %723 = vst [vmem:[%s284] sm:$0xff] %v721
          %724 = vst [vmem:[%s284 + $0x8] sm:$0xff] %v722
        $region56: #{feed_forward.1} parent=47 // pred_fallthru
          _
        %s725 = sand.u32 %s193, 1
        %s726 = scalar_lea.sflag [#allocation5], %s725
        %s727 = sand.u32 %s193, 1
        %s728 = smul.addr %s727, 16
        %s729 = scalar_lea.vmem [#allocation4], %s728
        // Predicated region
        $region57: #{feed_forward.1} parent=47 // pred_check
          %p730 = pneg %p203
        $region58: #{feed_forward.1} parent=47 // pred_check_branch
          %732 = sbr.rel (%p730) target = $region60
        $region59: #{feed_forward.1} parent=47 // pred_region
          %s733 = smul.u32 2, %s25
          %s735 = ssub.s32 256, 256
          %736 = vsyncadd %s726, %s735
          %s737 = smul.addr %s733, 128
          %s738 = scalar_lea.hbm %s7, %s737
          %s739 = sshll.u32 %s729, 4
          %s740 = int_to_ptr.vmem [resolvable:$true] %s739
          %745 = dma.vmem_to_hbm [thread:$0]  %s740, 256, %s738, %s726, 128, 128, 8
        $region60: #{feed_forward.1} parent=47 // pred_fallthru
          _
      $region48: #{feed_forward.1} parent=5 // pred_fallthru
        _
      %p746 = scmp.le.s32.totalorder 2, %s16
      // Predicated region
      $region61: #{feed_forward.1} parent=5 // pred_check
        %p747 = pneg %p746
      $region62: #{feed_forward.1} parent=5 // pred_check_branch
        %749 = sbr.rel (%p747) target = $region64
      $region63: #{feed_forward.1} parent=5 // pred_region
        %s750 = ssub.s32 %s16, 2
        // Predicated region
        $region65: #{feed_forward.1} parent=63 // pred_check
          %p751 = pneg %p209
        $region66: #{feed_forward.1} parent=63 // pred_check_branch
          %753 = sbr.rel (%p751) target = $region68
        $region67: #{feed_forward.1} parent=63 // pred_region
          %s754 = sand.u32 %s194, 1
          %s755 = scalar_lea.sflag [#allocation5], %s754
          %s756 = sand.u32 %s194, 1
          %s757 = smul.addr %s756, 16
          %s758 = scalar_lea.vmem [#allocation4], %s757
          %759 = dma.done %s755, 256
        $region68: #{feed_forward.1} parent=63 // pred_fallthru
          _
      $region64: #{feed_forward.1} parent=5 // pred_fallthru
        _
    $region6: #{feed_forward.1} parent=1 // loop_footer
      %s20 = sadd.s32 1, %s16
    $region7: #{feed_forward.1} parent=1 // loop_footer_branch
      %15 = sbr.rel target = $region3
    $region8: #{feed_forward.1} parent=1 // loop_exit
      _
    %760 = vsyncpa [#allocation5], 1
    %s761 = scalar_lea.sflag [#allocation5], 1
    %762 = vsyncpa %s761, 1

</llo_original>
